<compile_context>
chip_gen: v5e
topology: v5e:2x2
jax: 0.10.0
libtpu: 0.0.40
codegen_flags: <defaults>
</compile_context>

<pallas_src>
import functools

import jax
import jax.numpy as jnp
from jax import lax
from jax.experimental import pallas as pl
from jax.experimental.pallas import tpu as pltpu


def _round_up(x, m):
    return (x + m - 1) // m * m


# ----------------------------- Pallas kernel ------------------------------ #
def conv_bn_kernel(p_ref, w_ref, bias_ref, o_ref):
    # p_ref:    (tm, tk)  bf16 im2col patches tile
    # w_ref:    (tk, tn)  bf16 conv weights with BN scale folded in
    # bias_ref: (1,  tn)  f32 folded BN bias
    # o_ref:    (tm, tn)  f32 output tile; resident across the K grid axis
    #                     (its index_map ignores k), so it IS the accumulator.
    k = pl.program_id(2)

    @pl.when(k == 0)
    def _():
        o_ref[...] = jnp.zeros_like(o_ref)

    o_ref[...] += jnp.dot(p_ref[...], w_ref[...],
                          preferred_element_type=jnp.float32)

    @pl.when(k == pl.num_programs(2) - 1)
    def _():
        o_ref[...] = o_ref[...] + bias_ref[...]


# ----------------------------- tiling helpers ------------------------------ #
def _pick_cout_tiling(cout, tn_override=None):
    """Returns (Coutp, tn)."""
    if tn_override is not None:
        return _round_up(cout, tn_override), tn_override
    if cout <= 128:
        # Leave unpadded: masked output stores are cheaper than 2-16x lane
        # padding for small lateral convs (full-dim block is legal).
        return cout, cout
    coutp = _round_up(cout, 128)
    # 256-wide N feeds the 256x256 MXU on v6e/v7x and halves patch re-streams;
    # fall back to 128 (v5e-native) when 256 does not divide Coutp.
    tn = 256 if coutp % 256 == 0 else 128
    return coutp, tn


def _pick_k_tiling(kk, tk_max):
    """Returns (KKp, tk).  Never rounds K up to tk_max."""
    assert tk_max % 128 == 0, "tk_max must be a multiple of 128"
    if kk <= tk_max:
        return kk, kk            # single full-K block, no padding of patches
    kkp = _round_up(kk, 128)     # at most 127 padded columns
    q = kkp // 128
    best = 1
    for d in range(1, q + 1):
        if q % d == 0 and 128 * d <= tk_max:
            best = d
    return kkp, 128 * best


def _pick_m_tiling(m, n_cout_blocks, tm_max):
    tm = min(tm_max, _round_up(m, 8))
    # v7x has 2 TensorCores per chip: make sure the parallel grid has >= 2
    # blocks even when the Cout axis collapses to a single block.
    if n_cout_blocks == 1 and pl.cdiv(m, tm) < 2 and m > 8:
        tm = _round_up(pl.cdiv(m, 2), 8)
    return tm


# ------------------------------ matmul + bias ------------------------------ #
def _matmul_bias(patches, w_mat, bias, *, tm, tn, tk):
    """out = patches @ w_mat + bias  (M x Cout parallel grid, K reduction)."""
    M, KKp = patches.shape
    KKp2, Coutp = w_mat.shape
    assert KKp == KKp2 and KKp % tk == 0 and Coutp % tn == 0

    grid = (pl.cdiv(M, tm), Coutp // tn, KKp // tk)

    # Double-buffered VMEM footprint; raise the scoped limit only if needed
    # (16 MiB default on v5e, 32 MiB on v6e/v7x; cap below v7x's 64 MiB phys).
    vmem_bytes = 2 * (tm * tk * 2 + tk * tn * 2 + tm * tn * 4 + tn * 4)
    cp = dict(dimension_semantics=("parallel", "parallel", "arbitrary"))
    if vmem_bytes > (12 << 20):
        cp["vmem_limit_bytes"] = min(vmem_bytes + (8 << 20), 60 << 20)

    # Note: remainder M blocks (pl.cdiv) may hold garbage tail rows in VMEM;
    # they only land in masked-out output rows (no row reductions / ReLU in
    # the epilogue), so results stay correct.
    return pl.pallas_call(
        conv_bn_kernel,
        out_shape=jax.ShapeDtypeStruct((M, Coutp), jnp.float32),
        grid_spec=pltpu.PrefetchScalarGridSpec(
            num_scalar_prefetch=0,
            grid=grid,
            in_specs=[
                pl.BlockSpec((tm, tk), lambda i, j, k: (i, k)),
                pl.BlockSpec((tk, tn), lambda i, j, k: (k, j)),
                pl.BlockSpec((1, tn), lambda i, j, k: (0, j)),
            ],
            out_specs=pl.BlockSpec((tm, tn), lambda i, j, k: (i, j)),
        ),
        compiler_params=pltpu.CompilerParams(**cp),
    )(patches, w_mat, bias)


# ------------------------------- Glue (JAX) -------------------------------- #
def _im2col(x_nhwc, kh, kw, stride, padding, dilation):
    """x_nhwc: (N, H, W, Cin) -> patches (N*OH*OW, KH*KW*Cin), plus (OH, OW)."""
    N, H, W, Cin = x_nhwc.shape
    xp = jnp.pad(x_nhwc, ((0, 0), (padding, padding), (padding, padding), (0, 0)))
    Hp, Wp = H + 2 * padding, W + 2 * padding
    eff_kh = dilation * (kh - 1) + 1
    eff_kw = dilation * (kw - 1) + 1
    OH = (Hp - eff_kh) // stride + 1
    OW = (Wp - eff_kw) // stride + 1

    slices = []
    for i in range(kh):
        for j in range(kw):
            h0, w0 = i * dilation, j * dilation
            sl = lax.slice(
                xp,
                (0, h0, w0, 0),
                (N, h0 + (OH - 1) * stride + 1, w0 + (OW - 1) * stride + 1, Cin),
                (1, stride, stride, 1),
            )  # (N, OH, OW, Cin)
            slices.append(sl)
    # Tap order (kh, kw) matches the weight reshape in basic_conv2d_nhwc.
    patches = jnp.stack(slices, axis=3).reshape(N * OH * OW, kh * kw * Cin)
    return patches, OH, OW


def basic_conv2d_nhwc(x_nhwc, weight, gamma, beta, running_mean, running_var,
                      *, stride=1, padding=0, dilation=1, eps=1e-5,
                      tm=512, tn=None, tk_max=2048):
    """Conv2d(bias=False) -> BatchNorm2d (inference form). NHWC in / NHWC out."""
    N, H, W, Cin = x_nhwc.shape
    Cout, Cin2, KH, KW = weight.shape
    assert Cin == Cin2

    # Cast to bf16 BEFORE im2col: the 9x-inflated patch matrix is the dominant
    # HBM array -- materialize it directly in bf16 (halves its traffic).
    patches, OH, OW = _im2col(x_nhwc.astype(jnp.bfloat16), KH, KW,
                              stride, padding, dilation)
    M, KK = patches.shape

    # Fold BN (inference form): scale into the weights, bias added in-kernel.
    scale = gamma / jnp.sqrt(running_var + eps)          # (Cout,)
    bias = beta - running_mean * scale                   # (Cout,)

    # (Cout, Cin, KH, KW) -> (KH, KW, Cin, Cout) -> (KH*KW*Cin, Cout), scaled.
    w_mat = jnp.transpose(weight, (2, 3, 1, 0)).reshape(KH * KW * Cin, Cout)
    w_mat = w_mat * scale[None, :]

    Coutp, tn = _pick_cout_tiling(Cout, tn)
    KKp, tk = _pick_k_tiling(KK, tk_max)
    tm = _pick_m_tiling(M, Coutp // tn, tm)

    if KKp != KK:                    # only when KK > tk_max (<= 127 pad cols)
        patches = jnp.pad(patches, ((0, 0), (0, KKp - KK)))
        w_mat = jnp.pad(w_mat, ((0, KKp - KK), (0, 0)))
    if Coutp != Cout:
        w_mat = jnp.pad(w_mat, ((0, 0), (0, Coutp - Cout)))
        bias = jnp.pad(bias, (0, Coutp - Cout))

    out = _matmul_bias(
        patches,                                   # already bf16
        w_mat.astype(jnp.bfloat16),                # bf16 on the MXU, f32 acc
        bias.reshape(1, Coutp).astype(jnp.float32),
        tm=tm, tn=tn, tk=tk,
    )
    return out[:, :Cout].reshape(N, OH, OW, Cout)


def basic_conv2d(x_nchw, weight, gamma, beta, running_mean, running_var,
                 *, stride=1, padding=0, dilation=1, eps=1e-5,
                 tm=512, tn=None, tk_max=2048):
    """PyTorch-layout wrapper: (N, Cin, H, W) -> (N, Cout, OH, OW).

    In a conv *stack*, call basic_conv2d_nhwc directly and keep activations in
    NHWC -- the two transposes below each cost a full HBM read+write and exist
    only to match the nn.Module boundary.
    """
    x_nhwc = jnp.transpose(x_nchw, (0, 2, 3, 1))
    y = basic_conv2d_nhwc(x_nhwc, weight, gamma, beta, running_mean,
                          running_var, stride=stride, padding=padding,
                          dilation=dilation, eps=eps, tm=tm, tn=tn,
                          tk_max=tk_max)
    return jnp.transpose(y, (0, 3, 1, 2)).astype(jnp.float32)


# --------------------------------- Main ------------------------------------ #
if __name__ == "__main__":
    key = jax.random.PRNGKey(0)
    k_x, k_w = jax.random.split(key)

    # BasicConv2d(in_planes=4, out_planes=8, kernel_size=3, padding=1)
    N, Cin, H, W = 2, 4, 16, 16
    Cout, KH, KW = 8, 3, 3
    stride, padding, dilation = 1, 1, 1
    eps = 1e-5

    x = jax.random.normal(k_x, (N, Cin, H, W), dtype=jnp.float32)
    weight = 0.1 * jax.random.normal(k_w, (Cout, Cin, KH, KW), dtype=jnp.float32)

    # Deterministic BatchNorm parameters (inference-mode BN).
    gamma = jnp.linspace(0.5, 1.5, Cout, dtype=jnp.float32)
    beta = jnp.linspace(-0.2, 0.2, Cout, dtype=jnp.float32)
    running_mean = jnp.linspace(-0.1, 0.1, Cout, dtype=jnp.float32)
    running_var = jnp.linspace(0.8, 1.2, Cout, dtype=jnp.float32)

    fwd = jax.jit(functools.partial(
        basic_conv2d, stride=stride, padding=padding, dilation=dilation, eps=eps))
    y = jax.block_until_ready(fwd(x, weight, gamma, beta, running_mean, running_var))

    # Reference: same bf16 rounding of inputs / folded weights, f32 accumulation,
    # so only accumulation order differs from the kernel path.
    scale = gamma / jnp.sqrt(running_var + eps)
    bias = beta - running_mean * scale
    w_folded = weight * scale[:, None, None, None]
    x_bf = x.astype(jnp.bfloat16).astype(jnp.float32)
    w_bf = w_folded.astype(jnp.bfloat16).astype(jnp.float32)
    ref = lax.conv_general_dilated(
        x_bf, w_bf,
        window_strides=(stride, stride),
        padding=[(padding, padding), (padding, padding)],
        rhs_dilation=(dilation, dilation),
        dimension_numbers=("NCHW", "OIHW", "NCHW"),
    ) + bias[None, :, None, None]

    assert y.shape == (N, Cout, H, W)
    assert jnp.max(jnp.abs(y - ref)) < 1e-3

    print("KERNEL_OK")
</pallas_src>

<mosaic_0001>
module attributes {stable_mosaic.version = 11 : i64} {
  func.func @conv_bn_kernel(%arg0: i32, %arg1: i32, %arg2: i32, %arg3: memref<256x36xbf16, #tpu.memory_space<vmem>>, %arg4: memref<36x8xbf16, #tpu.memory_space<vmem>>, %arg5: memref<1x8xf32, #tpu.memory_space<vmem>>, %arg6: memref<256x8xf32, #tpu.memory_space<vmem>>) attributes {dimension_semantics = [#tpu.dimension_semantics<parallel>, #tpu.dimension_semantics<parallel>, #tpu.dimension_semantics<arbitrary>], iteration_bounds = array<i64: 2, 1, 1>, scalar_prefetch = 0 : i64, scratch_operands = 0 : i64, tpu.core_type = #tpu.core_type<tc>, window_params = [{transform_indices = @transform_0, window_bounds = array<i64: 256, 36>}, {transform_indices = @transform_1, window_bounds = array<i64: 36, 8>}, {transform_indices = @transform_2, window_bounds = array<i64: 1, 8>}, {transform_indices = @transform_3, window_bounds = array<i64: 256, 8>}]} {
    %c0_i32 = arith.constant 0 : i32
    %0 = arith.cmpi eq, %arg2, %c0_i32 : i32
    %1 = arith.extui %0 : i1 to i32
    %c0_i32_0 = arith.constant 0 : i32
    %2 = arith.cmpi ne, %1, %c0_i32_0 : i32
    scf.if %2 {
      %cst_10 = arith.constant 0.000000e+00 : f32
      %12 = vector.broadcast %cst_10 : f32 to vector<256x8xf32>
      %c0_11 = arith.constant 0 : index
      %c0_12 = arith.constant 0 : index
      %13 = vector.load %arg6[%c0_11, %c0_12] : memref<256x8xf32, #tpu.memory_space<vmem>>, vector<256x8xf32>
      tpu.vector_store %arg6[%c0_11, %c0_12], %12 {strides = array<i32>} : memref<256x8xf32, #tpu.memory_space<vmem>>, vector<256x8xf32>,
    } else {
    }
    %c0 = arith.constant 0 : index
    %c0_1 = arith.constant 0 : index
    %3 = vector.load %arg6[%c0, %c0_1] : memref<256x8xf32, #tpu.memory_space<vmem>>, vector<256x8xf32>
    %c0_2 = arith.constant 0 : index
    %c0_3 = arith.constant 0 : index
    %4 = vector.load %arg3[%c0_2, %c0_3] : memref<256x36xbf16, #tpu.memory_space<vmem>>, vector<256x36xbf16>
    %c0_4 = arith.constant 0 : index
    %c0_5 = arith.constant 0 : index
    %5 = vector.load %arg4[%c0_4, %c0_5] : memref<36x8xbf16, #tpu.memory_space<vmem>>, vector<36x8xbf16>
    %cst = arith.constant dense<0.000000e+00> : vector<256x8xf32>
    %6 = tpu.matmul %4, %5, %cst {dimension_numbers = #tpu.dot_dimension_numbers<[1], [0], [0], [1], [0, 0, 1, 1], [], []>} : vector<256x36xbf16>, vector<36x8xbf16>, vector<256x8xf32> -> vector<256x8xf32>
    %7 = arith.addf %3, %6 : vector<256x8xf32>
    %c0_6 = arith.constant 0 : index
    %c0_7 = arith.constant 0 : index
    %8 = vector.load %arg6[%c0_6, %c0_7] : memref<256x8xf32, #tpu.memory_space<vmem>>, vector<256x8xf32>
    tpu.vector_store %arg6[%c0_6, %c0_7], %7 {strides = array<i32>} : memref<256x8xf32, #tpu.memory_space<vmem>>, vector<256x8xf32>,
    %c0_i32_8 = arith.constant 0 : i32
    %9 = arith.cmpi eq, %arg2, %c0_i32_8 : i32
    %10 = arith.extui %9 : i1 to i32
    %c0_i32_9 = arith.constant 0 : i32
    %11 = arith.cmpi ne, %10, %c0_i32_9 : i32
    scf.if %11 {
      %c0_10 = arith.constant 0 : index
      %c0_11 = arith.constant 0 : index
      %12 = vector.load %arg6[%c0_10, %c0_11] : memref<256x8xf32, #tpu.memory_space<vmem>>, vector<256x8xf32>
      %c0_12 = arith.constant 0 : index
      %c0_13 = arith.constant 0 : index
      %13 = vector.load %arg5[%c0_12, %c0_13] : memref<1x8xf32, #tpu.memory_space<vmem>>, vector<1x8xf32>
      %14 = vector.broadcast %13 : vector<1x8xf32> to vector<256x8xf32>
      %15 = arith.addf %12, %14 : vector<256x8xf32>
      %c0_14 = arith.constant 0 : index
      %c0_15 = arith.constant 0 : index
      %16 = vector.load %arg6[%c0_14, %c0_15] : memref<256x8xf32, #tpu.memory_space<vmem>>, vector<256x8xf32>
      tpu.vector_store %arg6[%c0_14, %c0_15], %15 {strides = array<i32>} : memref<256x8xf32, #tpu.memory_space<vmem>>, vector<256x8xf32>,
    } else {
    }
    return
  }
  func.func @transform_0(%arg0: i32, %arg1: i32, %arg2: i32) -> (i32, i32) {
    %c0_i32 = arith.constant 0 : i32
    return %arg0, %arg2 : i32, i32
  }
  func.func @transform_1(%arg0: i32, %arg1: i32, %arg2: i32) -> (i32, i32) {
    %c0_i32 = arith.constant 0 : i32
    return %arg2, %arg1 : i32, i32
  }
  func.func @transform_2(%arg0: i32, %arg1: i32, %arg2: i32) -> (i32, i32) {
    %c0_i32 = arith.constant 0 : i32
    %c0_i32_0 = arith.constant 0 : i32
    return %c0_i32, %arg1 : i32, i32
  }
  func.func @transform_3(%arg0: i32, %arg1: i32, %arg2: i32) -> (i32, i32) {
    %c0_i32 = arith.constant 0 : i32
    return %arg0, %arg1 : i32, i32
  }
}

</mosaic_0001>

<llo_original>
// kernel: basic_conv2d.1
$region0: #{basic_conv2d.1}
  #allocation0 [shape = 'u32[]', space=smem, size = 0x4, offset = 0x4, fixed_abs, tag = 'smem constant byte address 0x4 - core index']
  #allocation1 [shape = 'u32[72,128]{1,0:T(1,128)}', space=vmem, size = 0x9000, scoped, tag = 'internal scratch']
  %s0 = inlined_call_operand.vmem [shape: bf16[512,36], index: 0, kind: input, shape index: {}]
  %s1 = inlined_call_operand.vmem [shape: bf16[36,8], index: 1, kind: input, shape index: {}]
  %s2 = inlined_call_operand.vmem [shape: f32[1,8], index: 2, kind: input, shape index: {}]
  %s3 = inlined_call_operand.vmem [shape: f32[512,8], index: 3, kind: output, shape index: {}]
  %s4 = sld [smem:[#allocation0]]
  $region53: #{basic_conv2d.1} parent=0
    _
  %s6 = ssub.s32 1, %s4
  %s7 = scalar_select 0, %s6, %s4
  loop: start=0, step=1, limit=4
  $region2: #{basic_conv2d.1} parent=0 // loop_pre_header
    _
  $region3: #{basic_conv2d.1} parent=0 // loop_header
    %s9 = sphi 0, %s13
    %p10 = scmp.ge.s32.totalorder %s9, 4
    %s16 = sphi 0, %s35
    %s17 = sphi 0, %s31
    %s18 = sphi 0, %s27
    %s19 = sphi 0, %s16
    %s20 = sphi 0, %s17
    %s21 = sphi 0, %s18
    %s22 = sphi 0, %s19
    %s23 = sphi 0, %s20
    %s24 = sphi 0, %s21
    %s40 = sphi 0, %s42
    %s43 = sphi 0, %s40
    %s44 = sphi 0, %s43
    %s60 = sphi 0, %s44
    %s68 = sphi 0, %s70
    %s71 = sphi 0, %s68
    %s72 = sphi 0, %s71
    %s88 = sphi 0, %s72
    %s94 = sphi 0, %s96
    %s97 = sphi 0, %s94
    %s98 = sphi 0, %s97
    %s114 = sphi 0, %s98
    %s122 = sphi 0, %s124
    %s125 = sphi 0, %s122
    %s126 = sphi 0, %s125
    %s142 = sphi 0, %s126
  $region4: #{basic_conv2d.1} parent=0 // loop_header_branch
    %12 = sbr.rel (%p10) target = $region8
  $region5: #{basic_conv2d.1} parent=0 // loop_body
    %s14 = ssub.s32 %s9, 1
    %s15 = ssub.s32 %s9, 2
    %s25 = sadd.s32 1, %s18
    %p26 = scmp.ge.s32.totalorder %s25, 1
    %s27 = scalar_select %p26, 0, %s25
    %s28 = sadd.s32 1, %s17
    %s29 = scalar_select %p26, %s28, %s17
    %p30 = scmp.ge.s32.totalorder %s29, 1
    %s31 = scalar_select %p30, 0, %s29
    %s32 = sadd.s32 1, %s16
    %s33 = scalar_select %p30, %s32, %s16
    %p34 = scmp.ge.s32.totalorder %s33, 2
    %s35 = scalar_select %p34, 0, %s33
    %s36 = ssub.s32 %s16, %s35
    %s37 = ssub.s32 %s18, %s27
    %s38 = sor.u32 %s36, %s37
    %p39 = scmp.eq.s32.totalorder %s38, 0
    %s41 = sadd.s32 %s40, 1
    %s42 = scalar_select %p39, %s40, %s41
    %p45 = pneg %p39
    %p46 = scmp.eq.s32.totalorder %s9, 1
    %p47 = por %p45, %p46
    %p48 = scmp.ne.s32.totalorder %s40, %s43
    %p49 = scmp.eq.s32.totalorder %s9, 0
    %p50 = por %p48, %p49
    %p51 = scmp.ne.s32.totalorder %s40, %s43
    %p52 = scmp.eq.s32.totalorder %s14, 1
    %p53 = por %p51, %p52
    %p54 = scmp.ne.s32.totalorder %s43, %s44
    %p55 = scmp.eq.s32.totalorder %s14, 0
    %p56 = por %p54, %p55
    %p57 = scmp.ne.s32.totalorder %s43, %s44
    %p58 = scmp.eq.s32.totalorder %s15, 1
    %p59 = por %p57, %p58
    %p61 = scmp.ne.s32.totalorder %s44, %s60
    %p62 = scmp.eq.s32.totalorder %s15, 0
    %p63 = por %p61, %p62
    %s64 = ssub.s32 %s18, %s27
    %s65 = ssub.s32 %s17, %s31
    %s66 = sor.u32 %s64, %s65
    %p67 = scmp.eq.s32.totalorder %s66, 0
    %s69 = sadd.s32 %s68, 1
    %s70 = scalar_select %p67, %s68, %s69
    %p73 = pneg %p67
    %p74 = scmp.eq.s32.totalorder %s9, 1
    %p75 = por %p73, %p74
    %p76 = scmp.ne.s32.totalorder %s68, %s71
    %p77 = scmp.eq.s32.totalorder %s9, 0
    %p78 = por %p76, %p77
    %p79 = scmp.ne.s32.totalorder %s68, %s71
    %p80 = scmp.eq.s32.totalorder %s14, 1
    %p81 = por %p79, %p80
    %p82 = scmp.ne.s32.totalorder %s71, %s72
    %p83 = scmp.eq.s32.totalorder %s14, 0
    %p84 = por %p82, %p83
    %p85 = scmp.ne.s32.totalorder %s71, %s72
    %p86 = scmp.eq.s32.totalorder %s15, 1
    %p87 = por %p85, %p86
    %p89 = scmp.ne.s32.totalorder %s72, %s88
    %p90 = scmp.eq.s32.totalorder %s15, 0
    %p91 = por %p89, %p90
    %s92 = ssub.s32 %s17, %s31
    %p93 = scmp.eq.s32.totalorder %s92, 0
    %s95 = sadd.s32 %s94, 1
    %s96 = scalar_select %p93, %s94, %s95
    %p99 = pneg %p93
    %p100 = scmp.eq.s32.totalorder %s9, 1
    %p101 = por %p99, %p100
    %p102 = scmp.ne.s32.totalorder %s94, %s97
    %p103 = scmp.eq.s32.totalorder %s9, 0
    %p104 = por %p102, %p103
    %p105 = scmp.ne.s32.totalorder %s94, %s97
    %p106 = scmp.eq.s32.totalorder %s14, 1
    %p107 = por %p105, %p106
    %p108 = scmp.ne.s32.totalorder %s97, %s98
    %p109 = scmp.eq.s32.totalorder %s14, 0
    %p110 = por %p108, %p109
    %p111 = scmp.ne.s32.totalorder %s97, %s98
    %p112 = scmp.eq.s32.totalorder %s15, 1
    %p113 = por %p111, %p112
    %p115 = scmp.ne.s32.totalorder %s98, %s114
    %p116 = scmp.eq.s32.totalorder %s15, 0
    %p117 = por %p115, %p116
    %s118 = ssub.s32 %s16, %s35
    %s119 = ssub.s32 %s17, %s31
    %s120 = sor.u32 %s118, %s119
    %p121 = scmp.eq.s32.totalorder %s120, 0
    %s123 = sadd.s32 %s122, 1
    %s124 = scalar_select %p121, %s122, %s123
    %p127 = pneg %p121
    %p128 = scmp.eq.s32.totalorder %s9, 1
    %p129 = por %p127, %p128
    %p130 = scmp.ne.s32.totalorder %s122, %s125
    %p131 = scmp.eq.s32.totalorder %s9, 0
    %p132 = por %p130, %p131
    %p133 = scmp.ne.s32.totalorder %s122, %s125
    %p134 = scmp.eq.s32.totalorder %s14, 1
    %p135 = por %p133, %p134
    %p136 = scmp.ne.s32.totalorder %s125, %s126
    %p137 = scmp.eq.s32.totalorder %s14, 0
    %p138 = por %p136, %p137
    %p139 = scmp.ne.s32.totalorder %s125, %s126
    %p140 = scmp.eq.s32.totalorder %s15, 1
    %p141 = por %p139, %p140
    %p143 = scmp.ne.s32.totalorder %s126, %s142
    %p144 = scmp.eq.s32.totalorder %s15, 0
    %p145 = por %p143, %p144
    %p146 = scmp.le.s32.totalorder 1, %s9
    %p147 = scmp.lt.s32.totalorder %s9, 3
    %p148 = pnand %p146, %p147
    %p149 = pneg %p148
    // Predicated region
    $region9: #{basic_conv2d.1} parent=5 // pred_check
      _
    $region10: #{basic_conv2d.1} parent=5 // pred_check_branch
      %151 = sbr.rel (%p148) target = $region12
    $region11: #{basic_conv2d.1} parent=5 // pred_region
      %s152 = ssub.s32 %s9, 1
      // Predicated region
      $region13: #{basic_conv2d.1} parent=11 // pred_check
        %p153 = pneg %p84
      $region14: #{basic_conv2d.1} parent=11 // pred_check_branch
        %155 = sbr.rel (%p153) target = $region16
      $region15: #{basic_conv2d.1} parent=11 // pred_region
        %s156 = smul.u32 5, %s21
        %p157 = scmp.lt.s32.totalorder %s156, 4
        %s158 = scalar_select %p157, %s156, 4
        %p159 = scmp.lt.s32.totalorder %s20, 0
        %s160 = scalar_select %p159, %s20, 0
        %s161 = sadd.s32 %s160, %s158
        %s162 = smul.addr %s161, 4
        %s163 = scalar_lea.vmem %s1, %s162
        %s164 = smul.u32 5, %s21
      $region16: #{basic_conv2d.1} parent=11 // pred_fallthru
        _
      // Predicated region
      $region17: #{basic_conv2d.1} parent=11 // pred_check
        %p165 = pneg %p110
      $region18: #{basic_conv2d.1} parent=11 // pred_check_branch
        %167 = sbr.rel (%p165) target = $region20
      $region19: #{basic_conv2d.1} parent=11 // pred_region
        %p168 = scmp.lt.s32.totalorder %s20, 0
        %s169 = scalar_select %p168, %s20, 0
        %s170 = scalar_lea.vmem %s2, %s169
      $region20: #{basic_conv2d.1} parent=11 // pred_fallthru
        _
    $region12: #{basic_conv2d.1} parent=5 // pred_fallthru
      _
    %p171 = scmp.lt.s32.totalorder %s9, 2
    // Predicated region
    $region21: #{basic_conv2d.1} parent=5 // pred_check
      %p172 = pneg %p171
    $region22: #{basic_conv2d.1} parent=5 // pred_check_branch
      %174 = sbr.rel (%p172) target = $region24
    $region23: #{basic_conv2d.1} parent=5 // pred_region
      // Predicated region
      $region25: #{basic_conv2d.1} parent=23 // pred_check
        %p175 = pneg %p50
      $region26: #{basic_conv2d.1} parent=23 // pred_check_branch
        %177 = sbr.rel (%p175) target = $region28
      $region27: #{basic_conv2d.1} parent=23 // pred_region
        %s178 = smul.u32 32, %s16
        %p179 = scmp.lt.s32.totalorder %s178, 63
        %s180 = scalar_select %p179, %s178, 63
        %p181 = scmp.lt.s32.totalorder %s18, 0
        %s182 = scalar_select %p181, %s18, 0
        %s183 = sadd.s32 %s182, %s180
        %s184 = smul.addr %s183, 4
        %s185 = scalar_lea.vmem %s0, %s184
        %s186 = smul.u32 32, %s16
      $region28: #{basic_conv2d.1} parent=23 // pred_fallthru
        _
    $region24: #{basic_conv2d.1} parent=5 // pred_fallthru
      _
    %p187 = scmp.le.s32.totalorder 1, %s9
    %p188 = scmp.lt.s32.totalorder %s9, 3
    %p189 = pnand %p187, %p188
    %p190 = pneg %p189
    // Predicated region
    $region29: #{basic_conv2d.1} parent=5 // pred_check
      _
    $region30: #{basic_conv2d.1} parent=5 // pred_check_branch
      %192 = sbr.rel (%p189) target = $region32
    $region31: #{basic_conv2d.1} parent=5 // pred_region
      %s193 = ssub.s32 %s9, 1
      %s194 = smul.u32 32, %s19
      %p195 = scmp.lt.s32.totalorder %s194, 63
      %s196 = scalar_select %p195, %s194, 63
      %p197 = scmp.lt.s32.totalorder %s21, 0
      %s198 = scalar_select %p197, %s21, 0
      %s199 = sadd.s32 %s198, %s196
      %s200 = smul.addr %s199, 4
      %s201 = scalar_lea.vmem %s0, %s200
      %p202 = pneg %p56
      %p203 = pneg %p53
      %s204 = smul.u32 5, %s21
      %p205 = scmp.lt.s32.totalorder %s204, 4
      %s206 = scalar_select %p205, %s204, 4
      %p207 = scmp.lt.s32.totalorder %s20, 0
      %s208 = scalar_select %p207, %s20, 0
      %s209 = sadd.s32 %s208, %s206
      %s210 = smul.addr %s209, 4
      %s211 = scalar_lea.vmem %s1, %s210
      %p212 = pneg %p84
      %p213 = pneg %p81
      %p214 = scmp.lt.s32.totalorder %s20, 0
      %s215 = scalar_select %p214, %s20, 0
      %s216 = scalar_lea.vmem %s2, %s215
      %p217 = pneg %p110
      %p218 = pneg %p107
      %p219 = pneg %p138
      %p220 = pneg %p135
      %s221 = smul.u32 32, %s19
      %p222 = scmp.lt.s32.totalorder %s221, 63
      %s223 = scalar_select %p222, %s221, 63
      %p224 = scmp.lt.s32.totalorder %s20, 0
      %s225 = scalar_select %p224, %s20, 0
      %s226 = sadd.s32 %s225, %s223
      %s227 = smul.addr %s226, 8
      %s228 = scalar_lea.vmem %s3, %s227
      %s229 = smul.u32 32, %s19
      %p230 = scmp.lt.s32.totalorder %s229, 63
      %s231 = scalar_select %p230, %s229, 63
      %p232 = scmp.lt.s32.totalorder %s21, 0
      %s233 = scalar_select %p232, %s21, 0
      %s234 = sadd.s32 %s233, %s231
      %s235 = smul.addr %s234, 4
      %s236 = scalar_lea.vmem %s0, %s235
      %s237 = smul.u32 32, %s19
      %s238 = smul.u32 5, %s21
      %p239 = scmp.lt.s32.totalorder %s238, 4
      %s240 = scalar_select %p239, %s238, 4
      %p241 = scmp.lt.s32.totalorder %s20, 0
      %s242 = scalar_select %p241, %s20, 0
      %s243 = sadd.s32 %s242, %s240
      %s244 = smul.addr %s243, 4
      %s245 = scalar_lea.vmem %s1, %s244
      %s246 = smul.u32 5, %s21
      %p247 = scmp.lt.s32.totalorder %s20, 0
      %s248 = scalar_select %p247, %s20, 0
      %s249 = scalar_lea.vmem %s2, %s248
      %s250 = smul.u32 32, %s19
      %p251 = scmp.lt.s32.totalorder %s250, 63
      %s252 = scalar_select %p251, %s250, 63
      %p253 = scmp.lt.s32.totalorder %s20, 0
      %s254 = scalar_select %p253, %s20, 0
      %s255 = sadd.s32 %s254, %s252
      %s256 = smul.addr %s255, 8
      %s257 = scalar_lea.vmem %s3, %s256
      %s258 = smul.u32 32, %s19
      %p260 = scmp.eq.s32.totalorder %s21, 0
      // Predicated region
      $region33: #{basic_conv2d.1} parent=31 // pred_check
        %p261 = pneg %p260
      $region34: #{basic_conv2d.1} parent=31 // pred_check_branch
        %263 = sbr.rel (%p261) target = $region36
      $region35: #{basic_conv2d.1} parent=31 // pred_region
        %vm264 = vcmask 64512
        %265 = vst.msk [vmem:[%s257] sm:$0xff] %vm264, 0.0
        %266 = vst.msk [vmem:[%s257 + $0x8] sm:$0xff] %vm264, 0.0
        %267 = vst.msk [vmem:[%s257 + $0x10] sm:$0xff] %vm264, 0.0
        %268 = vst.msk [vmem:[%s257 + $0x18] sm:$0xff] %vm264, 0.0
        %269 = vst.msk [vmem:[%s257 + $0x20] sm:$0xff] %vm264, 0.0
        %270 = vst.msk [vmem:[%s257 + $0x28] sm:$0xff] %vm264, 0.0
        %271 = vst.msk [vmem:[%s257 + $0x30] sm:$0xff] %vm264, 0.0
        %272 = vst.msk [vmem:[%s257 + $0x38] sm:$0xff] %vm264, 0.0
        %273 = vst.msk [vmem:[%s257 + $0x40] sm:$0xff] %vm264, 0.0
        %274 = vst.msk [vmem:[%s257 + $0x48] sm:$0xff] %vm264, 0.0
        %275 = vst.msk [vmem:[%s257 + $0x50] sm:$0xff] %vm264, 0.0
        %276 = vst.msk [vmem:[%s257 + $0x58] sm:$0xff] %vm264, 0.0
        %277 = vst.msk [vmem:[%s257 + $0x60] sm:$0xff] %vm264, 0.0
        %278 = vst.msk [vmem:[%s257 + $0x68] sm:$0xff] %vm264, 0.0
        %279 = vst.msk [vmem:[%s257 + $0x70] sm:$0xff] %vm264, 0.0
        %280 = vst.msk [vmem:[%s257 + $0x78] sm:$0xff] %vm264, 0.0
        %281 = vst.msk [vmem:[%s257 + $0x80] sm:$0xff] %vm264, 0.0
        %282 = vst.msk [vmem:[%s257 + $0x88] sm:$0xff] %vm264, 0.0
        %283 = vst.msk [vmem:[%s257 + $0x90] sm:$0xff] %vm264, 0.0
        %284 = vst.msk [vmem:[%s257 + $0x98] sm:$0xff] %vm264, 0.0
        %285 = vst.msk [vmem:[%s257 + $0xa0] sm:$0xff] %vm264, 0.0
        %286 = vst.msk [vmem:[%s257 + $0xa8] sm:$0xff] %vm264, 0.0
        %287 = vst.msk [vmem:[%s257 + $0xb0] sm:$0xff] %vm264, 0.0
        %288 = vst.msk [vmem:[%s257 + $0xb8] sm:$0xff] %vm264, 0.0
        %289 = vst.msk [vmem:[%s257 + $0xc0] sm:$0xff] %vm264, 0.0
        %290 = vst.msk [vmem:[%s257 + $0xc8] sm:$0xff] %vm264, 0.0
        %291 = vst.msk [vmem:[%s257 + $0xd0] sm:$0xff] %vm264, 0.0
        %292 = vst.msk [vmem:[%s257 + $0xd8] sm:$0xff] %vm264, 0.0
        %293 = vst.msk [vmem:[%s257 + $0xe0] sm:$0xff] %vm264, 0.0
        %294 = vst.msk [vmem:[%s257 + $0xe8] sm:$0xff] %vm264, 0.0
        %295 = vst.msk [vmem:[%s257 + $0xf0] sm:$0xff] %vm264, 0.0
        %296 = vst.msk [vmem:[%s257 + $0xf8] sm:$0xff] %vm264, 0.0
      $region36: #{basic_conv2d.1} parent=31 // pred_fallthru
        _
      %v297 = vld [vmem:[%s257] sm:$0xff]
      %v298 = vld [vmem:[%s257 + $0x8] sm:$0xff]
      %v299 = vld [vmem:[%s257 + $0x10] sm:$0xff]
      %v300 = vld [vmem:[%s257 + $0x18] sm:$0xff]
      %v301 = vld [vmem:[%s257 + $0x20] sm:$0xff]
      %v302 = vld [vmem:[%s257 + $0x28] sm:$0xff]
      %v303 = vld [vmem:[%s257 + $0x30] sm:$0xff]
      %v304 = vld [vmem:[%s257 + $0x38] sm:$0xff]
      %v305 = vld [vmem:[%s257 + $0x40] sm:$0xff]
      %v306 = vld [vmem:[%s257 + $0x48] sm:$0xff]
      %v307 = vld [vmem:[%s257 + $0x50] sm:$0xff]
      %v308 = vld [vmem:[%s257 + $0x58] sm:$0xff]
      %v309 = vld [vmem:[%s257 + $0x60] sm:$0xff]
      %v310 = vld [vmem:[%s257 + $0x68] sm:$0xff]
      %v311 = vld [vmem:[%s257 + $0x70] sm:$0xff]
      %v312 = vld [vmem:[%s257 + $0x78] sm:$0xff]
      %v313 = vld [vmem:[%s257 + $0x80] sm:$0xff]
      %v314 = vld [vmem:[%s257 + $0x88] sm:$0xff]
      %v315 = vld [vmem:[%s257 + $0x90] sm:$0xff]
      %v316 = vld [vmem:[%s257 + $0x98] sm:$0xff]
      %v317 = vld [vmem:[%s257 + $0xa0] sm:$0xff]
      %v318 = vld [vmem:[%s257 + $0xa8] sm:$0xff]
      %v319 = vld [vmem:[%s257 + $0xb0] sm:$0xff]
      %v320 = vld [vmem:[%s257 + $0xb8] sm:$0xff]
      %v321 = vld [vmem:[%s257 + $0xc0] sm:$0xff]
      %v322 = vld [vmem:[%s257 + $0xc8] sm:$0xff]
      %v323 = vld [vmem:[%s257 + $0xd0] sm:$0xff]
      %v324 = vld [vmem:[%s257 + $0xd8] sm:$0xff]
      %v325 = vld [vmem:[%s257 + $0xe0] sm:$0xff]
      %v326 = vld [vmem:[%s257 + $0xe8] sm:$0xff]
      %v327 = vld [vmem:[%s257 + $0xf0] sm:$0xff]
      %v328 = vld [vmem:[%s257 + $0xf8] sm:$0xff]
      %v329 = vld [vmem:[%s236] sm:$0xf]
      %v330 = vld [vmem:[%s236 + $0x4] sm:$0xf]
      %v331 = vld [vmem:[%s236 + $0x8] sm:$0xf]
      %v332 = vld [vmem:[%s236 + $0xc] sm:$0xf]
      %v333 = vld [vmem:[%s236 + $0x10] sm:$0xf]
      %v334 = vld [vmem:[%s236 + $0x14] sm:$0xf]
      %v335 = vld [vmem:[%s236 + $0x18] sm:$0xf]
      %v336 = vld [vmem:[%s236 + $0x1c] sm:$0xf]
      %v337 = vld [vmem:[%s236 + $0x20] sm:$0xf]
      %v338 = vld [vmem:[%s236 + $0x24] sm:$0xf]
      %v339 = vld [vmem:[%s236 + $0x28] sm:$0xf]
      %v340 = vld [vmem:[%s236 + $0x2c] sm:$0xf]
      %v341 = vld [vmem:[%s236 + $0x30] sm:$0xf]
      %v342 = vld [vmem:[%s236 + $0x34] sm:$0xf]
      %v343 = vld [vmem:[%s236 + $0x38] sm:$0xf]
      %v344 = vld [vmem:[%s236 + $0x3c] sm:$0xf]
      %v345 = vld [vmem:[%s236 + $0x40] sm:$0xf]
      %v346 = vld [vmem:[%s236 + $0x44] sm:$0xf]
      %v347 = vld [vmem:[%s236 + $0x48] sm:$0xf]
      %v348 = vld [vmem:[%s236 + $0x4c] sm:$0xf]
      %v349 = vld [vmem:[%s236 + $0x50] sm:$0xf]
      %v350 = vld [vmem:[%s236 + $0x54] sm:$0xf]
      %v351 = vld [vmem:[%s236 + $0x58] sm:$0xf]
      %v352 = vld [vmem:[%s236 + $0x5c] sm:$0xf]
      %v353 = vld [vmem:[%s236 + $0x60] sm:$0xf]
      %v354 = vld [vmem:[%s236 + $0x64] sm:$0xf]
      %v355 = vld [vmem:[%s236 + $0x68] sm:$0xf]
      %v356 = vld [vmem:[%s236 + $0x6c] sm:$0xf]
      %v357 = vld [vmem:[%s236 + $0x70] sm:$0xf]
      %v358 = vld [vmem:[%s236 + $0x74] sm:$0xf]
      %v359 = vld [vmem:[%s236 + $0x78] sm:$0xf]
      %v360 = vld [vmem:[%s236 + $0x7c] sm:$0xf]
      %v361 = vld [vmem:[%s245] sm:$0xf]
      %v362 = vld [vmem:[%s245 + $0x4] sm:$0xf]
      %v363 = vld [vmem:[%s245 + $0x8] sm:$0xf]
      %v364 = vld [vmem:[%s245 + $0xc] sm:$0xf]
      %v365 = vld [vmem:[%s245 + $0x10] sm:$0x3]
      %v398 = vunpack.c.l.b16 %v329
      %v399 = vunpack.c.l.b16 %v330
      %v400 = vunpack.c.l.b16 %v331
      %v401 = vunpack.c.l.b16 %v332
      %v402 = vunpack.c.l.b16 %v333
      %v403 = vunpack.c.l.b16 %v334
      %v404 = vunpack.c.l.b16 %v335
      %v405 = vunpack.c.l.b16 %v336
      %v406 = vunpack.c.l.b16 %v337
      %v407 = vunpack.c.l.b16 %v338
      %v408 = vunpack.c.l.b16 %v339
      %v409 = vunpack.c.l.b16 %v340
      %v410 = vunpack.c.l.b16 %v341
      %v411 = vunpack.c.l.b16 %v342
      %v412 = vunpack.c.l.b16 %v343
      %v413 = vunpack.c.l.b16 %v344
      %v414 = vunpack.c.l.b16 %v345
      %v415 = vunpack.c.l.b16 %v346
      %v416 = vunpack.c.l.b16 %v347
      %v417 = vunpack.c.l.b16 %v348
      %v418 = vunpack.c.l.b16 %v349
      %v419 = vunpack.c.l.b16 %v350
      %v420 = vunpack.c.l.b16 %v351
      %v421 = vunpack.c.l.b16 %v352
      %v422 = vunpack.c.l.b16 %v353
      %v423 = vunpack.c.l.b16 %v354
      %v424 = vunpack.c.l.b16 %v355
      %v425 = vunpack.c.l.b16 %v356
      %v426 = vunpack.c.l.b16 %v357
      %v427 = vunpack.c.l.b16 %v358
      %v428 = vunpack.c.l.b16 %v359
      %v429 = vunpack.c.l.b16 %v360
      %v430 = vpack.c.b16 %v399, %v398
      %v431 = vpack.c.b16 %v401, %v400
      %v432 = vpack.c.b16 %v403, %v402
      %v433 = vpack.c.b16 %v405, %v404
      %v434 = vpack.c.b16 %v407, %v406
      %v435 = vpack.c.b16 %v409, %v408
      %v436 = vpack.c.b16 %v411, %v410
      %v437 = vpack.c.b16 %v413, %v412
      %v438 = vpack.c.b16 %v415, %v414
      %v439 = vpack.c.b16 %v417, %v416
      %v440 = vpack.c.b16 %v419, %v418
      %v441 = vpack.c.b16 %v421, %v420
      %v442 = vpack.c.b16 %v423, %v422
      %v443 = vpack.c.b16 %v425, %v424
      %v444 = vpack.c.b16 %v427, %v426
      %v445 = vpack.c.b16 %v429, %v428
      %v451 = vunpack.c.l.b16 %v361
      %v452 = vunpack.c.l.b16 %v362
      %v453 = vunpack.c.l.b16 %v363
      %v454 = vunpack.c.l.b16 %v364
      %v455 = vunpack.c.l.b16 %v365
      %v456 = vpack.c.b16 %v452, %v451
      %v457 = vpack.c.b16 %v454, %v453
      %v458 = vpack.c.b16 %v455, %v455
      %vm461 = vcmask 293888
      %v463 = vsel %vm461, %v430, 0
      %v466 = vsel %vm461, %v431, 0
      %v469 = vsel %vm461, %v432, 0
      %v472 = vsel %vm461, %v433, 0
      %v475 = vsel %vm461, %v434, 0
      %v478 = vsel %vm461, %v435, 0
      %v481 = vsel %vm461, %v436, 0
      %v484 = vsel %vm461, %v437, 0
      %v487 = vsel %vm461, %v438, 0
      %v490 = vsel %vm461, %v439, 0
      %v493 = vsel %vm461, %v440, 0
      %v496 = vsel %vm461, %v441, 0
      %v499 = vsel %vm461, %v442, 0
      %v502 = vsel %vm461, %v443, 0
      %v505 = vsel %vm461, %v444, 0
      %v508 = vsel %vm461, %v445, 0
      %vm510 = vcmask 1041408
      %v512 = vsel %vm510, %v458, 0
      %514 = vmatpush.bf16.msra.mxu0 0
      %515 = vmatpush.bf16.msra.mxu0 0
      %516 = vmatpush.bf16.msra.mxu0 0
      %517 = vmatpush.bf16.msra.mxu0 0
      %518 = vmatpush.bf16.msra.mxu0 0
      %519 = vmatpush.bf16.msra.mxu0 %v512
      %520 = vmatpush.bf16.msra.mxu0 %v457
      %521 = vmatpush.bf16.msra.mxu0 %v456
      %522 = vmatmul.bf16.gmra.mxu0 %v463
      %v523 = vpop.f32.mrf.mxu0
      %v524 = vadd.f32 0.0, %v523
      %v525 = vpop.f32.mrf.mxu0
      %v526 = vadd.f32 0.0, %v525
      %527 = vmatmul.bf16.gmra.mxu0 %v466
      %v528 = vpop.f32.mrf.mxu0
      %v529 = vadd.f32 0.0, %v528
      %v530 = vpop.f32.mrf.mxu0
      %v531 = vadd.f32 0.0, %v530
      %532 = vmatmul.bf16.gmra.mxu0 %v469
      %v533 = vpop.f32.mrf.mxu0
      %v534 = vadd.f32 0.0, %v533
      %v535 = vpop.f32.mrf.mxu0
      %v536 = vadd.f32 0.0, %v535
      %537 = vmatmul.bf16.gmra.mxu0 %v472
      %v538 = vpop.f32.mrf.mxu0
      %v539 = vadd.f32 0.0, %v538
      %v540 = vpop.f32.mrf.mxu0
      %v541 = vadd.f32 0.0, %v540
      %542 = vmatmul.bf16.gmra.mxu0 %v475
      %v543 = vpop.f32.mrf.mxu0
      %v544 = vadd.f32 0.0, %v543
      %v545 = vpop.f32.mrf.mxu0
      %v546 = vadd.f32 0.0, %v545
      %547 = vmatmul.bf16.gmra.mxu0 %v478
      %v548 = vpop.f32.mrf.mxu0
      %v549 = vadd.f32 0.0, %v548
      %v550 = vpop.f32.mrf.mxu0
      %v551 = vadd.f32 0.0, %v550
      %552 = vmatmul.bf16.gmra.mxu0 %v481
      %v553 = vpop.f32.mrf.mxu0
      %v554 = vadd.f32 0.0, %v553
      %v555 = vpop.f32.mrf.mxu0
      %v556 = vadd.f32 0.0, %v555
      %557 = vmatmul.bf16.gmra.mxu0 %v484
      %v558 = vpop.f32.mrf.mxu0
      %v559 = vadd.f32 0.0, %v558
      %v560 = vpop.f32.mrf.mxu0
      %v561 = vadd.f32 0.0, %v560
      %562 = vmatmul.bf16.gmra.mxu0 %v487
      %v563 = vpop.f32.mrf.mxu0
      %v564 = vadd.f32 0.0, %v563
      %v565 = vpop.f32.mrf.mxu0
      %v566 = vadd.f32 0.0, %v565
      %567 = vmatmul.bf16.gmra.mxu0 %v490
      %v568 = vpop.f32.mrf.mxu0
      %v569 = vadd.f32 0.0, %v568
      %v570 = vpop.f32.mrf.mxu0
      %v571 = vadd.f32 0.0, %v570
      %572 = vmatmul.bf16.gmra.mxu0 %v493
      %v573 = vpop.f32.mrf.mxu0
      %v574 = vadd.f32 0.0, %v573
      %v575 = vpop.f32.mrf.mxu0
      %v576 = vadd.f32 0.0, %v575
      %577 = vmatmul.bf16.gmra.mxu0 %v496
      %v578 = vpop.f32.mrf.mxu0
      %v579 = vadd.f32 0.0, %v578
      %v580 = vpop.f32.mrf.mxu0
      %v581 = vadd.f32 0.0, %v580
      %582 = vmatmul.bf16.gmra.mxu0 %v499
      %v583 = vpop.f32.mrf.mxu0
      %v584 = vadd.f32 0.0, %v583
      %v585 = vpop.f32.mrf.mxu0
      %v586 = vadd.f32 0.0, %v585
      %587 = vmatmul.bf16.gmra.mxu0 %v502
      %v588 = vpop.f32.mrf.mxu0
      %v589 = vadd.f32 0.0, %v588
      %v590 = vpop.f32.mrf.mxu0
      %v591 = vadd.f32 0.0, %v590
      %592 = vmatmul.bf16.gmra.mxu0 %v505
      %v593 = vpop.f32.mrf.mxu0
      %v594 = vadd.f32 0.0, %v593
      %v595 = vpop.f32.mrf.mxu0
      %v596 = vadd.f32 0.0, %v595
      %597 = vmatmul.bf16.gmra.mxu0 %v508
      %v598 = vpop.f32.mrf.mxu0
      %v599 = vadd.f32 0.0, %v598
      %v600 = vpop.f32.mrf.mxu0
      %v601 = vadd.f32 0.0, %v600
      %602 = vdwg.mxu0
      %v603 = vadd.f32 %v297, %v524
      %v604 = vadd.f32 %v298, %v526
      %v605 = vadd.f32 %v299, %v529
      %v606 = vadd.f32 %v300, %v531
      %v607 = vadd.f32 %v301, %v534
      %v608 = vadd.f32 %v302, %v536
      %v609 = vadd.f32 %v303, %v539
      %v610 = vadd.f32 %v304, %v541
      %v611 = vadd.f32 %v305, %v544
      %v612 = vadd.f32 %v306, %v546
      %v613 = vadd.f32 %v307, %v549
      %v614 = vadd.f32 %v308, %v551
      %v615 = vadd.f32 %v309, %v554
      %v616 = vadd.f32 %v310, %v556
      %v617 = vadd.f32 %v311, %v559
      %v618 = vadd.f32 %v312, %v561
      %v619 = vadd.f32 %v313, %v564
      %v620 = vadd.f32 %v314, %v566
      %v621 = vadd.f32 %v315, %v569
      %v622 = vadd.f32 %v316, %v571
      %v623 = vadd.f32 %v317, %v574
      %v624 = vadd.f32 %v318, %v576
      %v625 = vadd.f32 %v319, %v579
      %v626 = vadd.f32 %v320, %v581
      %v627 = vadd.f32 %v321, %v584
      %v628 = vadd.f32 %v322, %v586
      %v629 = vadd.f32 %v323, %v589
      %v630 = vadd.f32 %v324, %v591
      %v631 = vadd.f32 %v325, %v594
      %v632 = vadd.f32 %v326, %v596
      %v633 = vadd.f32 %v327, %v599
      %v634 = vadd.f32 %v328, %v601
      %vm635 = vcmask 64512
      %636 = vst.msk [vmem:[%s257] sm:$0xff] %vm635, %v603
      %637 = vst.msk [vmem:[%s257 + $0x8] sm:$0xff] %vm635, %v604
      %638 = vst.msk [vmem:[%s257 + $0x10] sm:$0xff] %vm635, %v605
      %639 = vst.msk [vmem:[%s257 + $0x18] sm:$0xff] %vm635, %v606
      %640 = vst.msk [vmem:[%s257 + $0x20] sm:$0xff] %vm635, %v607
      %641 = vst.msk [vmem:[%s257 + $0x28] sm:$0xff] %vm635, %v608
      %642 = vst.msk [vmem:[%s257 + $0x30] sm:$0xff] %vm635, %v609
      %643 = vst.msk [vmem:[%s257 + $0x38] sm:$0xff] %vm635, %v610
      %644 = vst.msk [vmem:[%s257 + $0x40] sm:$0xff] %vm635, %v611
      %645 = vst.msk [vmem:[%s257 + $0x48] sm:$0xff] %vm635, %v612
      %646 = vst.msk [vmem:[%s257 + $0x50] sm:$0xff] %vm635, %v613
      %647 = vst.msk [vmem:[%s257 + $0x58] sm:$0xff] %vm635, %v614
      %648 = vst.msk [vmem:[%s257 + $0x60] sm:$0xff] %vm635, %v615
      %649 = vst.msk [vmem:[%s257 + $0x68] sm:$0xff] %vm635, %v616
      %650 = vst.msk [vmem:[%s257 + $0x70] sm:$0xff] %vm635, %v617
      %651 = vst.msk [vmem:[%s257 + $0x78] sm:$0xff] %vm635, %v618
      %652 = vst.msk [vmem:[%s257 + $0x80] sm:$0xff] %vm635, %v619
      %653 = vst.msk [vmem:[%s257 + $0x88] sm:$0xff] %vm635, %v620
      %654 = vst.msk [vmem:[%s257 + $0x90] sm:$0xff] %vm635, %v621
      %655 = vst.msk [vmem:[%s257 + $0x98] sm:$0xff] %vm635, %v622
      %656 = vst.msk [vmem:[%s257 + $0xa0] sm:$0xff] %vm635, %v623
      %657 = vst.msk [vmem:[%s257 + $0xa8] sm:$0xff] %vm635, %v624
      %658 = vst.msk [vmem:[%s257 + $0xb0] sm:$0xff] %vm635, %v625
      %659 = vst.msk [vmem:[%s257 + $0xb8] sm:$0xff] %vm635, %v626
      %660 = vst.msk [vmem:[%s257 + $0xc0] sm:$0xff] %vm635, %v627
      %661 = vst.msk [vmem:[%s257 + $0xc8] sm:$0xff] %vm635, %v628
      %662 = vst.msk [vmem:[%s257 + $0xd0] sm:$0xff] %vm635, %v629
      %663 = vst.msk [vmem:[%s257 + $0xd8] sm:$0xff] %vm635, %v630
      %664 = vst.msk [vmem:[%s257 + $0xe0] sm:$0xff] %vm635, %v631
      %665 = vst.msk [vmem:[%s257 + $0xe8] sm:$0xff] %vm635, %v632
      %666 = vst.msk [vmem:[%s257 + $0xf0] sm:$0xff] %vm635, %v633
      %667 = vst.msk [vmem:[%s257 + $0xf8] sm:$0xff] %vm635, %v634
      // Predicated region
      $region37: #{basic_conv2d.1} parent=31 // pred_check
        %p668 = pneg %p260
      $region38: #{basic_conv2d.1} parent=31 // pred_check_branch
        %670 = sbr.rel (%p668) target = $region40
      $region39: #{basic_conv2d.1} parent=31 // pred_region
        %v671 = vld [vmem:[%s257] sm:$0xff]
        %v672 = vld [vmem:[%s257 + $0x8] sm:$0xff]
        %v673 = vld [vmem:[%s257 + $0x10] sm:$0xff]
        %v674 = vld [vmem:[%s257 + $0x18] sm:$0xff]
        %v675 = vld [vmem:[%s257 + $0x20] sm:$0xff]
        %v676 = vld [vmem:[%s257 + $0x28] sm:$0xff]
        %v677 = vld [vmem:[%s257 + $0x30] sm:$0xff]
        %v678 = vld [vmem:[%s257 + $0x38] sm:$0xff]
        %v679 = vld [vmem:[%s257 + $0x40] sm:$0xff]
        %v680 = vld [vmem:[%s257 + $0x48] sm:$0xff]
        %v681 = vld [vmem:[%s257 + $0x50] sm:$0xff]
        %v682 = vld [vmem:[%s257 + $0x58] sm:$0xff]
        %v683 = vld [vmem:[%s257 + $0x60] sm:$0xff]
        %v684 = vld [vmem:[%s257 + $0x68] sm:$0xff]
        %v685 = vld [vmem:[%s257 + $0x70] sm:$0xff]
        %v686 = vld [vmem:[%s257 + $0x78] sm:$0xff]
        %v687 = vld [vmem:[%s257 + $0x80] sm:$0xff]
        %v688 = vld [vmem:[%s257 + $0x88] sm:$0xff]
        %v689 = vld [vmem:[%s257 + $0x90] sm:$0xff]
        %v690 = vld [vmem:[%s257 + $0x98] sm:$0xff]
        %v691 = vld [vmem:[%s257 + $0xa0] sm:$0xff]
        %v692 = vld [vmem:[%s257 + $0xa8] sm:$0xff]
        %v693 = vld [vmem:[%s257 + $0xb0] sm:$0xff]
        %v694 = vld [vmem:[%s257 + $0xb8] sm:$0xff]
        %v695 = vld [vmem:[%s257 + $0xc0] sm:$0xff]
        %v696 = vld [vmem:[%s257 + $0xc8] sm:$0xff]
        %v697 = vld [vmem:[%s257 + $0xd0] sm:$0xff]
        %v698 = vld [vmem:[%s257 + $0xd8] sm:$0xff]
        %v699 = vld [vmem:[%s257 + $0xe0] sm:$0xff]
        %v700 = vld [vmem:[%s257 + $0xe8] sm:$0xff]
        %v701 = vld [vmem:[%s257 + $0xf0] sm:$0xff]
        %v702 = vld [vmem:[%s257 + $0xf8] sm:$0xff]
        %v703 = vld [vmem:[%s249] sm:$0x1]
        %v705 = vperm.slane %v703, 0
        %v707 = vadd.f32 %v671, %v705
        %v708 = vadd.f32 %v672, %v705
        %v709 = vadd.f32 %v673, %v705
        %v710 = vadd.f32 %v674, %v705
        %v711 = vadd.f32 %v675, %v705
        %v712 = vadd.f32 %v676, %v705
        %v713 = vadd.f32 %v677, %v705
        %v714 = vadd.f32 %v678, %v705
        %v715 = vadd.f32 %v679, %v705
        %v716 = vadd.f32 %v680, %v705
        %v717 = vadd.f32 %v681, %v705
        %v718 = vadd.f32 %v682, %v705
        %v719 = vadd.f32 %v683, %v705
        %v720 = vadd.f32 %v684, %v705
        %v721 = vadd.f32 %v685, %v705
        %v722 = vadd.f32 %v686, %v705
        %v723 = vadd.f32 %v687, %v705
        %v724 = vadd.f32 %v688, %v705
        %v725 = vadd.f32 %v689, %v705
        %v726 = vadd.f32 %v690, %v705
        %v727 = vadd.f32 %v691, %v705
        %v728 = vadd.f32 %v692, %v705
        %v729 = vadd.f32 %v693, %v705
        %v730 = vadd.f32 %v694, %v705
        %v731 = vadd.f32 %v695, %v705
        %v732 = vadd.f32 %v696, %v705
        %v733 = vadd.f32 %v697, %v705
        %v734 = vadd.f32 %v698, %v705
        %v735 = vadd.f32 %v699, %v705
        %v736 = vadd.f32 %v700, %v705
        %v737 = vadd.f32 %v701, %v705
        %v738 = vadd.f32 %v702, %v705
        %739 = vst.msk [vmem:[%s257] sm:$0xff] %vm635, %v707
        %740 = vst.msk [vmem:[%s257 + $0x8] sm:$0xff] %vm635, %v708
        %741 = vst.msk [vmem:[%s257 + $0x10] sm:$0xff] %vm635, %v709
        %742 = vst.msk [vmem:[%s257 + $0x18] sm:$0xff] %vm635, %v710
        %743 = vst.msk [vmem:[%s257 + $0x20] sm:$0xff] %vm635, %v711
        %744 = vst.msk [vmem:[%s257 + $0x28] sm:$0xff] %vm635, %v712
        %745 = vst.msk [vmem:[%s257 + $0x30] sm:$0xff] %vm635, %v713
        %746 = vst.msk [vmem:[%s257 + $0x38] sm:$0xff] %vm635, %v714
        %747 = vst.msk [vmem:[%s257 + $0x40] sm:$0xff] %vm635, %v715
        %748 = vst.msk [vmem:[%s257 + $0x48] sm:$0xff] %vm635, %v716
        %749 = vst.msk [vmem:[%s257 + $0x50] sm:$0xff] %vm635, %v717
        %750 = vst.msk [vmem:[%s257 + $0x58] sm:$0xff] %vm635, %v718
        %751 = vst.msk [vmem:[%s257 + $0x60] sm:$0xff] %vm635, %v719
        %752 = vst.msk [vmem:[%s257 + $0x68] sm:$0xff] %vm635, %v720
        %753 = vst.msk [vmem:[%s257 + $0x70] sm:$0xff] %vm635, %v721
        %754 = vst.msk [vmem:[%s257 + $0x78] sm:$0xff] %vm635, %v722
        %755 = vst.msk [vmem:[%s257 + $0x80] sm:$0xff] %vm635, %v723
        %756 = vst.msk [vmem:[%s257 + $0x88] sm:$0xff] %vm635, %v724
        %757 = vst.msk [vmem:[%s257 + $0x90] sm:$0xff] %vm635, %v725
        %758 = vst.msk [vmem:[%s257 + $0x98] sm:$0xff] %vm635, %v726
        %759 = vst.msk [vmem:[%s257 + $0xa0] sm:$0xff] %vm635, %v727
        %760 = vst.msk [vmem:[%s257 + $0xa8] sm:$0xff] %vm635, %v728
        %761 = vst.msk [vmem:[%s257 + $0xb0] sm:$0xff] %vm635, %v729
        %762 = vst.msk [vmem:[%s257 + $0xb8] sm:$0xff] %vm635, %v730
        %763 = vst.msk [vmem:[%s257 + $0xc0] sm:$0xff] %vm635, %v731
        %764 = vst.msk [vmem:[%s257 + $0xc8] sm:$0xff] %vm635, %v732
        %765 = vst.msk [vmem:[%s257 + $0xd0] sm:$0xff] %vm635, %v733
        %766 = vst.msk [vmem:[%s257 + $0xd8] sm:$0xff] %vm635, %v734
        %767 = vst.msk [vmem:[%s257 + $0xe0] sm:$0xff] %vm635, %v735
        %768 = vst.msk [vmem:[%s257 + $0xe8] sm:$0xff] %vm635, %v736
        %769 = vst.msk [vmem:[%s257 + $0xf0] sm:$0xff] %vm635, %v737
        %770 = vst.msk [vmem:[%s257 + $0xf8] sm:$0xff] %vm635, %v738
      $region40: #{basic_conv2d.1} parent=31 // pred_fallthru
        _
      %s771 = smul.u32 32, %s19
      %p772 = scmp.lt.s32.totalorder %s771, 63
      %s773 = scalar_select %p772, %s771, 63
      %p774 = scmp.lt.s32.totalorder %s20, 0
      %s775 = scalar_select %p774, %s20, 0
      %s776 = sadd.s32 %s775, %s773
      %s777 = smul.addr %s776, 8
      %s778 = scalar_lea.vmem %s3, %s777
      // Predicated region
      $region41: #{basic_conv2d.1} parent=31 // pred_check
        %p779 = pneg %p135
      $region42: #{basic_conv2d.1} parent=31 // pred_check_branch
        %781 = sbr.rel (%p779) target = $region44
      $region43: #{basic_conv2d.1} parent=31 // pred_region
        %s782 = smul.u32 32, %s19
      $region44: #{basic_conv2d.1} parent=31 // pred_fallthru
        _
    $region32: #{basic_conv2d.1} parent=5 // pred_fallthru
      _
    %p783 = scmp.le.s32.totalorder 2, %s9
    // Predicated region
    $region45: #{basic_conv2d.1} parent=5 // pred_check
      %p784 = pneg %p783
    $region46: #{basic_conv2d.1} parent=5 // pred_check_branch
      %786 = sbr.rel (%p784) target = $region48
    $region47: #{basic_conv2d.1} parent=5 // pred_region
      %s787 = ssub.s32 %s9, 2
      // Predicated region
      $region49: #{basic_conv2d.1} parent=47 // pred_check
        %p788 = pneg %p141
      $region50: #{basic_conv2d.1} parent=47 // pred_check_branch
        %790 = sbr.rel (%p788) target = $region52
      $region51: #{basic_conv2d.1} parent=47 // pred_region
        %s791 = smul.u32 32, %s22
        %p792 = scmp.lt.s32.totalorder %s791, 63
        %s793 = scalar_select %p792, %s791, 63
        %p794 = scmp.lt.s32.totalorder %s23, 0
        %s795 = scalar_select %p794, %s23, 0
        %s796 = sadd.s32 %s795, %s793
        %s797 = smul.addr %s796, 8
        %s798 = scalar_lea.vmem %s3, %s797
      $region52: #{basic_conv2d.1} parent=47 // pred_fallthru
        _
    $region48: #{basic_conv2d.1} parent=5 // pred_fallthru
      _
  $region6: #{basic_conv2d.1} parent=0 // loop_footer
    %s13 = sadd.s32 1, %s9
  $region7: #{basic_conv2d.1} parent=0 // loop_footer_branch
    %8 = sbr.rel target = $region3
  $region8: #{basic_conv2d.1} parent=0 // loop_exit
    _

</llo_original>
